<compile_context>
chip_gen: v7x
topology: tpu7x:2x2x1
jax: 0.10.0
libtpu: 0.0.40
codegen_flags: <defaults>
</compile_context>

<pallas_src>
import functools

import jax
import jax.numpy as jnp
from jax.experimental import pallas as pl
from jax.experimental.pallas import tpu as pltpu


def _round_up(x: int, m: int) -> int:
    return ((x + m - 1) // m) * m


def _round_down(x: int, m: int) -> int:
    return (x // m) * m


def dro_weighted_sumsq_kernel(data_ref, target_ref, wslice_ref, w_ref, b_ref,
                              o_ref, *, n, tile_n):
    """Accumulates sum_i w_i * (model(x_i) - y_i)^2 (per feature) over tiles.

    o_ref is a resident (1, C) f32 accumulator; the cross-lane reduce to a
    scalar happens in the wrapper.
    """
    i = pl.program_id(0)

    @pl.when(i == 0)
    def _init():
        o_ref[...] = jnp.zeros_like(o_ref)

    # model(data): linear layer on the MXU, f32 accumulation.
    out = jnp.dot(data_ref[...], w_ref[...],
                  preferred_element_type=jnp.float32)
    out = out + b_ref[...].astype(jnp.float32)

    # Fused per-sample squared error + DRO re-weighting (all f32 on the VPU).
    diff = out - target_ref[...].astype(jnp.float32)
    weighted = diff * diff * wslice_ref[...].astype(jnp.float32)  # [TILE_N, C]

    # Tail-tile masking (only emitted when the batch is ragged; n and tile_n
    # are static).  jnp.where also squashes any NaN/Inf that garbage rows of a
    # partial block might produce.
    if n % tile_n != 0:
        rows = i * tile_n + jax.lax.broadcasted_iota(jnp.int32, (tile_n, 1), 0)
        weighted = jnp.where(rows < n, weighted, 0.0)

    # Sublane reduce only; keep the lane dimension dense in the accumulator.
    o_ref[...] += jnp.sum(weighted, axis=0, keepdims=True)


def dro_forward(data, target, w, b, weights, index_slice,
                *, number_devices, scale, tile_n=None):
    """DRO.forward: D * sum(l * weights[idx]) - scale/2 * ||weights - 1/n||^2."""
    n, d = data.shape
    c = target.shape[-1]
    number_data = weights.shape[0]

    # Glue: gather per-sample DRO weights (N * 4 bytes, negligible) and a 2-D
    # bias layout.
    wslice = weights[index_slice].astype(jnp.float32).reshape(n, 1)
    b2d = jnp.reshape(b, (1, c))

    # --- generation-aware VMEM budget -----------------------------------
    vmem_limit = 32 * 1024 * 1024          # safe on v7x (64 MiB physical)
    per_copy_budget = 2 * 1024 * 1024      # ~2 MiB of `data` per DMA step
    try:
        info = pltpu.get_tpu_info()
        if getattr(info, "vmem_capacity_bytes", 0) >= 100 * 1024 * 1024:
            # v5e / v6e: 128 MiB physical VMEM -> bigger scoped limit & tiles.
            vmem_limit = 64 * 1024 * 1024
            per_copy_budget = 4 * 1024 * 1024
    except Exception:
        pass

    # --- tile sizing ------------------------------------------------------
    d_item = jnp.dtype(data.dtype).itemsize
    t_item = jnp.dtype(target.dtype).itemsize
    w_item = jnp.dtype(w.dtype).itemsize
    sublane = {1: 32, 2: 16, 4: 8}.get(d_item, 8)

    # Streamed bytes / row (double-buffered data + target + wslice) plus f32
    # intermediates (out/diff/weighted/select) generated per row in the body.
    row_stream = 2 * (d * d_item + c * t_item + 4)
    row_inter = 4 * c * 4
    resident = 2 * (d * c + c) * w_item + 4 * c     # W + b (2 bufs) + acc
    headroom = 4 * 1024 * 1024
    avail = max(1, vmem_limit - resident - headroom)

    if tile_n is None:
        rows_budget = per_copy_budget // max(1, d * d_item)
        rows_vmem = avail // max(1, row_stream + row_inter)
        tile_n = min(rows_budget, rows_vmem, _round_up(n, sublane))
    else:
        tile_n = min(int(tile_n), _round_up(n, sublane))
    tile_n = max(sublane, _round_down(tile_n, sublane))

    grid = (pl.cdiv(n, tile_n),)

    kernel = functools.partial(dro_weighted_sumsq_kernel, n=n, tile_n=tile_n)

    partial_sums = pl.pallas_call(
        kernel,
        out_shape=jax.ShapeDtypeStruct((1, c), jnp.float32),
        grid_spec=pltpu.PrefetchScalarGridSpec(
            num_scalar_prefetch=0,
            grid=grid,
            in_specs=[
                pl.BlockSpec((tile_n, d), lambda i: (i, 0)),   # data tiles
                pl.BlockSpec((tile_n, c), lambda i: (i, 0)),   # target tiles
                pl.BlockSpec((tile_n, 1), lambda i: (i, 0)),   # per-sample w
                pl.BlockSpec((d, c), lambda i: (0, 0)),        # W (resident)
                pl.BlockSpec((1, c), lambda i: (0, 0)),        # b (resident)
            ],
            out_specs=pl.BlockSpec((1, c), lambda i: (0, 0)),  # resident acc
        ),
        compiler_params=pltpu.CompilerParams(
            dimension_semantics=("arbitrary",),
            vmem_limit_bytes=vmem_limit,
        ),
    )(data, target, wslice, w, b2d)

    weighted_sumsq = jnp.sum(partial_sums)

    # Batch-independent scalar glue (no HBM traffic worth a kernel):
    #   * 1/C from the per-sample mean and the number_devices factor,
    #   * scale/2 * ||weights - 1/number_data||^2 regularizer.
    val = (number_devices / c) * weighted_sumsq
    val = val - 0.5 * scale * jnp.sum((weights - 1.0 / number_data) ** 2)
    return val


def dro_forward_ref(data, target, w, b, weights, index_slice,
                    *, number_devices, scale):
    number_data = weights.shape[0]
    out = data @ w + b[None, :]
    l = jnp.mean((out - target) ** 2, axis=-1)      # per-sample loss
    val = number_devices * jnp.sum(l * weights[index_slice])
    val -= scale / 2.0 * jnp.sum((weights - 1.0 / number_data) ** 2)
    return val


if __name__ == "__main__":
    def run_case(seed, N, D, C, number_data, number_devices, scale,
                 dtype, uniform_weights, rtol, atol, tile_n=None):
        key = jax.random.PRNGKey(seed)
        k_data, k_target, k_w, k_b, k_idx, k_wt = jax.random.split(key, 6)
        data = jax.random.normal(k_data, (N, D), dtype=jnp.float32)
        target = jax.random.normal(k_target, (N, C), dtype=jnp.float32)
        w = jax.random.normal(k_w, (D, C), dtype=jnp.float32) * 0.1
        b = jax.random.normal(k_b, (C,), dtype=jnp.float32) * 0.1

        if uniform_weights:
            weights = jnp.ones((number_data,), jnp.float32)
            weights = weights / weights.sum()          # module init: 1/n each
        else:
            weights = jax.nn.softmax(jax.random.normal(k_wt, (number_data,)))
        index_slice = jax.random.randint(k_idx, (N,), 0, number_data,
                                         dtype=jnp.int32)

        data_c = data.astype(dtype)
        target_c = target.astype(dtype)
        w_c = w.astype(dtype)
        b_c = b.astype(dtype)

        got = dro_forward(data_c, target_c, w_c, b_c, weights, index_slice,
                          number_devices=number_devices, scale=scale,
                          tile_n=tile_n)
        got = jax.block_until_ready(got)

        ref = dro_forward_ref(data_c.astype(jnp.float32),
                              target_c.astype(jnp.float32),
                              w_c.astype(jnp.float32),
                              b_c.astype(jnp.float32),
                              weights, index_slice,
                              number_devices=number_devices, scale=scale)
        assert jnp.allclose(got, ref, rtol=rtol, atol=atol), (got, ref)

    # Case 1: tiny single-tile problem matching the module's defaults
    # (uniform weights -> regularizer is exactly 0).
    run_case(seed=0, N=8, D=32, C=4, number_data=16, number_devices=2,
             scale=1.0, dtype=jnp.float32, uniform_weights=True,
             rtol=1e-5, atol=1e-5)

    # Case 2: ragged-free single-tile f32 problem (auto tile = 600 rows),
    # non-uniform weights so the regularizer term is exercised.
    run_case(seed=1, N=600, D=64, C=4, number_data=1024, number_devices=4,
             scale=0.7, dtype=jnp.bfloat16 if False else jnp.float32,
             uniform_weights=False, rtol=1e-4, atol=1e-5)

    # Case 3: same problem with native bf16 inputs (no wrapper up-cast;
    # 16-row sublane tile of 608 rows -> tail masking inside one tile).
    run_case(seed=1, N=600, D=64, C=4, number_data=1024, number_devices=4,
             scale=0.7, dtype=jnp.bfloat16, uniform_weights=False,
             rtol=2e-2, atol=1e-3)

    # Case 4: forced small tile (128 rows) -> 3 grid steps with a masked
    # ragged tail (300 % 128 != 0), exercising multi-step accumulation.
    run_case(seed=2, N=300, D=64, C=4, number_data=512, number_devices=3,
             scale=0.3, dtype=jnp.float32, uniform_weights=False,
             rtol=1e-4, atol=1e-5, tile_n=128)

    print("KERNEL_OK")
</pallas_src>

<mosaic_0001>
module attributes {stable_mosaic.version = 11 : i64} {
  func.func @dro_weighted_sumsq_kernel(%arg0: i32, %arg1: memref<8x32xf32, #tpu.memory_space<vmem>>, %arg2: memref<8x4xf32, #tpu.memory_space<vmem>>, %arg3: memref<8x1xf32, #tpu.memory_space<vmem>>, %arg4: memref<32x4xf32, #tpu.memory_space<vmem>>, %arg5: memref<1x4xf32, #tpu.memory_space<vmem>>, %arg6: memref<1x4xf32, #tpu.memory_space<vmem>>) attributes {dimension_semantics = [#tpu.dimension_semantics<arbitrary>], iteration_bounds = array<i64: 1>, scalar_prefetch = 0 : i64, scratch_operands = 0 : i64, tpu.core_type = #tpu.core_type<tc>, window_params = [{transform_indices = @transform_0, window_bounds = array<i64: 8, 32>}, {transform_indices = @transform_1, window_bounds = array<i64: 8, 4>}, {transform_indices = @transform_2, window_bounds = array<i64: 8, 1>}, {pipeline_mode = #tpu.pipeline_mode<synchronous>, transform_indices = @transform_3, window_bounds = array<i64: 32, 4>}, {pipeline_mode = #tpu.pipeline_mode<synchronous>, transform_indices = @transform_4, window_bounds = array<i64: 1, 4>}, {pipeline_mode = #tpu.pipeline_mode<synchronous>, transform_indices = @transform_5, window_bounds = array<i64: 1, 4>}]} {
    %c0_i32 = arith.constant 0 : i32
    %0 = arith.cmpi eq, %arg0, %c0_i32 : i32
    %1 = arith.extui %0 : i1 to i32
    %c0_i32_0 = arith.constant 0 : i32
    %2 = arith.cmpi ne, %1, %c0_i32_0 : i32
    scf.if %2 {
      %cst_15 = arith.constant 0.000000e+00 : f32
      %20 = vector.broadcast %cst_15 : f32 to vector<1x4xf32>
      %c0_16 = arith.constant 0 : index
      %c0_17 = arith.constant 0 : index
      %21 = vector.load %arg6[%c0_16, %c0_17] : memref<1x4xf32, #tpu.memory_space<vmem>>, vector<1x4xf32>
      tpu.vector_store %arg6[%c0_16, %c0_17], %20 {strides = array<i32>} : memref<1x4xf32, #tpu.memory_space<vmem>>, vector<1x4xf32>,
    } else {
    }
    %c0 = arith.constant 0 : index
    %c0_1 = arith.constant 0 : index
    %3 = vector.load %arg1[%c0, %c0_1] : memref<8x32xf32, #tpu.memory_space<vmem>>, vector<8x32xf32>
    %c0_2 = arith.constant 0 : index
    %c0_3 = arith.constant 0 : index
    %4 = vector.load %arg4[%c0_2, %c0_3] : memref<32x4xf32, #tpu.memory_space<vmem>>, vector<32x4xf32>
    %cst = arith.constant dense<0.000000e+00> : vector<8x4xf32>
    %5 = tpu.matmul %3, %4, %cst {dimension_numbers = #tpu.dot_dimension_numbers<[1], [0], [0], [1], [0, 0, 1, 1], [], []>} : vector<8x32xf32>, vector<32x4xf32>, vector<8x4xf32> -> vector<8x4xf32>
    %c0_4 = arith.constant 0 : index
    %c0_5 = arith.constant 0 : index
    %6 = vector.load %arg5[%c0_4, %c0_5] : memref<1x4xf32, #tpu.memory_space<vmem>>, vector<1x4xf32>
    %7 = vector.broadcast %6 : vector<1x4xf32> to vector<8x4xf32>
    %8 = arith.addf %5, %7 : vector<8x4xf32>
    %c0_6 = arith.constant 0 : index
    %c0_7 = arith.constant 0 : index
    %9 = vector.load %arg2[%c0_6, %c0_7] : memref<8x4xf32, #tpu.memory_space<vmem>>, vector<8x4xf32>
    %10 = arith.subf %8, %9 : vector<8x4xf32>
    %11 = arith.mulf %10, %10 : vector<8x4xf32>
    %c0_8 = arith.constant 0 : index
    %c0_9 = arith.constant 0 : index
    %12 = vector.load %arg3[%c0_8, %c0_9] : memref<8x1xf32, #tpu.memory_space<vmem>>, vector<8x1xf32>
    %13 = vector.broadcast %12 : vector<8x1xf32> to vector<8x4xf32>
    %14 = arith.mulf %11, %13 : vector<8x4xf32>
    %c0_10 = arith.constant 0 : index
    %c0_11 = arith.constant 0 : index
    %15 = vector.load %arg6[%c0_10, %c0_11] : memref<1x4xf32, #tpu.memory_space<vmem>>, vector<1x4xf32>
    %cst_12 = arith.constant dense<0.000000e+00> : vector<4xf32>
    %16 = vector.multi_reduction <add>, %14, %cst_12 [0] : vector<8x4xf32> to vector<4xf32>
    %17 = vector.shape_cast %16 : vector<4xf32> to vector<1x4xf32>
    %18 = arith.addf %15, %17 : vector<1x4xf32>
    %c0_13 = arith.constant 0 : index
    %c0_14 = arith.constant 0 : index
    %19 = vector.load %arg6[%c0_13, %c0_14] : memref<1x4xf32, #tpu.memory_space<vmem>>, vector<1x4xf32>
    tpu.vector_store %arg6[%c0_13, %c0_14], %18 {strides = array<i32>} : memref<1x4xf32, #tpu.memory_space<vmem>>, vector<1x4xf32>,
    return
  }
  func.func @transform_0(%arg0: i32) -> (i32, i32) {
    %c0_i32 = arith.constant 0 : i32
    %c0_i32_0 = arith.constant 0 : i32
    return %arg0, %c0_i32 : i32, i32
  }
  func.func @transform_1(%arg0: i32) -> (i32, i32) {
    %c0_i32 = arith.constant 0 : i32
    %c0_i32_0 = arith.constant 0 : i32
    return %arg0, %c0_i32 : i32, i32
  }
  func.func @transform_2(%arg0: i32) -> (i32, i32) {
    %c0_i32 = arith.constant 0 : i32
    %c0_i32_0 = arith.constant 0 : i32
    return %arg0, %c0_i32 : i32, i32
  }
  func.func @transform_3(%arg0: i32) -> (i32, i32) {
    %c0_i32 = arith.constant 0 : i32
    %c0_i32_0 = arith.constant 0 : i32
    %c0_i32_1 = arith.constant 0 : i32
    return %c0_i32, %c0_i32_0 : i32, i32
  }
  func.func @transform_4(%arg0: i32) -> (i32, i32) {
    %c0_i32 = arith.constant 0 : i32
    %c0_i32_0 = arith.constant 0 : i32
    %c0_i32_1 = arith.constant 0 : i32
    return %c0_i32, %c0_i32_0 : i32, i32
  }
  func.func @transform_5(%arg0: i32) -> (i32, i32) {
    %c0_i32 = arith.constant 0 : i32
    %c0_i32_0 = arith.constant 0 : i32
    %c0_i32_1 = arith.constant 0 : i32
    return %c0_i32, %c0_i32_0 : i32, i32
  }
}

</mosaic_0001>

<llo_original>
// kernel: tpu_custom_call.1
$region0: #{tpu_custom_call.1}
  #allocation0 [shape = 'u32[]', space=smem, size = 0x4, offset = 0x4, fixed_abs, tag = 'smem constant byte address 0x4 - core index']
  #allocation1 [shape = 'u32[144,128]{1,0:T(1,128)}', space=vmem, size = 0x12000, scoped, tag = 'internal scratch']
  %s0 = inlined_call_operand.vmem [shape: f32[8,32], index: 0, kind: input, shape index: {}]
  %s1 = inlined_call_operand.vmem [shape: f32[8,4], index: 1, kind: input, shape index: {}]
  %s2 = inlined_call_operand.vmem [shape: f32[8,1], index: 2, kind: input, shape index: {}]
  %s3 = inlined_call_operand.vmem [shape: f32[32,4], index: 3, kind: input, shape index: {}]
  %s4 = inlined_call_operand.vmem [shape: f32[1,4], index: 4, kind: input, shape index: {}]
  %s5 = inlined_call_operand.hbm [shape: f32[1,4], index: 5, kind: output, shape index: {}]
  %s6 = sld [smem:[#allocation0]]
  $region34: #{tpu_custom_call.1} parent=0
    _
  %s8 = ssub.s32 1, %s6
  %s9 = scalar_select 0, %s8, %s6
  $region1: #{tpu_custom_call.1} parent=0
    #allocation2 [shape = 'u8[512]{0}', space=vmem, size = 0x400, scoped, tag = 'output window, operand 0, single buffered']
    #allocation3 [shape = 's32[1]{0}', space=sflag, size = 0x4, scoped, tag = 'scoped memory for tpu_custom_call.1']
    %10 = vsyncpa [#allocation3], 0
    // Predicated region
    $region2: #{tpu_custom_call.1} parent=1 // pred_check
      _
    $region3: #{tpu_custom_call.1} parent=1 // pred_check_branch
      %12 = sbr.rel (0) target = $region5
    $region4: #{tpu_custom_call.1} parent=1 // pred_region
      _
    $region5: #{tpu_custom_call.1} parent=1 // pred_fallthru
      _
    // Predicated region
    $region6: #{tpu_custom_call.1} parent=1 // pred_check
      _
    $region7: #{tpu_custom_call.1} parent=1 // pred_check_branch
      %14 = sbr.rel (0) target = $region9
    $region8: #{tpu_custom_call.1} parent=1 // pred_region
      _
    $region9: #{tpu_custom_call.1} parent=1 // pred_fallthru
      _
    // Predicated region
    $region10: #{tpu_custom_call.1} parent=1 // pred_check
      _
    $region11: #{tpu_custom_call.1} parent=1 // pred_check_branch
      %16 = sbr.rel (0) target = $region13
    $region12: #{tpu_custom_call.1} parent=1 // pred_region
      _
    $region13: #{tpu_custom_call.1} parent=1 // pred_fallthru
      _
    // Predicated region
    $region14: #{tpu_custom_call.1} parent=1 // pred_check
      _
    $region15: #{tpu_custom_call.1} parent=1 // pred_check_branch
      %18 = sbr.rel (0) target = $region17
    $region16: #{tpu_custom_call.1} parent=1 // pred_region
      _
    $region17: #{tpu_custom_call.1} parent=1 // pred_fallthru
      _
    // Predicated region
    $region18: #{tpu_custom_call.1} parent=1 // pred_check
      _
    $region19: #{tpu_custom_call.1} parent=1 // pred_check_branch
      %20 = sbr.rel (0) target = $region21
    $region20: #{tpu_custom_call.1} parent=1 // pred_region
      _
    $region21: #{tpu_custom_call.1} parent=1 // pred_fallthru
      _
    %p21 = scmp.eq.s32.totalorder 0, 0
    // Predicated region
    $region22: #{tpu_custom_call.1} parent=1 // pred_check
      %p22 = pneg %p21
    $region23: #{tpu_custom_call.1} parent=1 // pred_check_branch
      %24 = sbr.rel (%p22) target = $region25
    $region24: #{tpu_custom_call.1} parent=1 // pred_region
      %vm25 = vcmask 24576
      %26 = vst.msk [vmem:[#allocation2] sm:$0x1] %vm25, 0.0
    $region25: #{tpu_custom_call.1} parent=1 // pred_fallthru
      _
    %v27 = vld [vmem:[%s0] sm:$0xff]
    %v28 = vld [vmem:[%s3] sm:$0xff]
    %v29 = vld [vmem:[%s3 + $0x8] sm:$0xff]
    %v30 = vld [vmem:[%s3 + $0x10] sm:$0xff]
    %v31 = vld [vmem:[%s3 + $0x18] sm:$0xff]
    %v32 = vld [vmem:[%s4] sm:$0x1]
    %v34 = vlaneseq
    %v35 = vshrl.u32 %v34, 7
    %v36 = vsub.s32 0, %v35
    %v37 = vrot.slane %v32, %v36
    %vm39 = vcmask 261120
    %v41 = vsel %vm39, %v27, 0
    %43 = vmatprep.subr.mxu0 0.0
    %44 = vmatpush1.msra.mxu0 %v28
    %45 = vmatprep.subr.mxu0 0.0
    %46 = vmatpush1.msra.mxu0 %v29
    %47 = vmatprep.subr.mxu0 0.0
    %48 = vmatpush1.msra.mxu0 %v30
    %49 = vmatprep.subr.mxu0 0.0
    %50 = vmatpush1.msra.mxu0 %v31
    %51 = vmatprep.subr.mxu0 0.0
    %52 = vmatpush1.msra.mxu0 0.0
    %53 = vmatprep.subr.mxu0 0.0
    %54 = vmatpush1.msra.mxu0 0.0
    %55 = vmatprep.subr.mxu0 0.0
    %56 = vmatpush1.msra.mxu0 0.0
    %57 = vmatprep.subr.mxu0 0.0
    %58 = vmatpush1.msra.mxu0 0.0
    %59 = vmatprep.subr.mxu0 0.0
    %60 = vmatpush1.msra.mxu0 0.0
    %61 = vmatprep.subr.mxu0 0.0
    %62 = vmatpush1.msra.mxu0 0.0
    %63 = vmatprep.subr.mxu0 0.0
    %64 = vmatpush1.msra.mxu0 0.0
    %65 = vmatprep.subr.mxu0 0.0
    %66 = vmatpush1.msra.mxu0 0.0
    %67 = vmatprep.subr.mxu0 0.0
    %68 = vmatpush1.msra.mxu0 0.0
    %69 = vmatprep.subr.mxu0 0.0
    %70 = vmatpush1.msra.mxu0 0.0
    %71 = vmatprep.subr.mxu0 0.0
    %72 = vmatpush1.msra.mxu0 0.0
    %73 = vmatprep.subr.mxu0 0.0
    %74 = vmatpush1.msra.mxu0 0.0
    %75 = vmatprep.subr.mxu0 0.0
    %76 = vmatpush1.msra.mxu0 0.0
    %77 = vmatprep.subr.mxu0 0.0
    %78 = vmatpush1.msra.mxu0 0.0
    %79 = vmatprep.subr.mxu0 0.0
    %80 = vmatpush1.msra.mxu0 0.0
    %81 = vmatprep.subr.mxu0 0.0
    %82 = vmatpush1.msra.mxu0 0.0
    %83 = vmatprep.subr.mxu0 0.0
    %84 = vmatpush1.msra.mxu0 0.0
    %85 = vmatprep.subr.mxu0 0.0
    %86 = vmatpush1.msra.mxu0 0.0
    %87 = vmatprep.subr.mxu0 0.0
    %88 = vmatpush1.msra.mxu0 0.0
    %89 = vmatprep.subr.mxu0 0.0
    %90 = vmatpush1.msra.mxu0 0.0
    %91 = vmatprep.subr.mxu0 0.0
    %92 = vmatpush1.msra.mxu0 0.0
    %93 = vmatprep.subr.mxu0 0.0
    %94 = vmatpush1.msra.mxu0 0.0
    %95 = vmatprep.subr.mxu0 0.0
    %96 = vmatpush1.msra.mxu0 0.0
    %97 = vmatprep.subr.mxu0 0.0
    %98 = vmatpush1.msra.mxu0 0.0
    %99 = vmatprep.subr.mxu0 0.0
    %100 = vmatpush1.msra.mxu0 0.0
    %101 = vmatprep.subr.mxu0 0.0
    %102 = vmatpush1.msra.mxu0 0.0
    %103 = vmatprep.subr.mxu0 0.0
    %104 = vmatpush1.msra.mxu0 0.0
    %105 = vmatprep.subr.mxu0 0.0
    %106 = vmatpush1.msra.mxu0 0.0
    %107 = vmatprep.mubr.f32.mxu0 0.0
    %108 = vmatmul.mubr.f32.gmra.mrb[0].mxu0 %v41
    %v109 = vpop.f32.mrb[0].mxu0
    %v110 = vadd.f32 %v37, %v109
    %v111 = vpop.f32.mrb[0].mxu0
    %112 = vdwg.mxu0
    %v113 = vld [vmem:[%s1] sm:$0xff]
    %v114 = vsub.f32 %v110, %v113
    %v115 = vmul.f32 %v114, %v114
    %v116 = vld [vmem:[%s2] sm:$0xff]
    %118 = vset.pattern.permute.xlu0 0
    %119 = vperm.xlu0 %118, %v116
    %v120 = vpop.permute.xlu0 %119
    %v122 = vmul.f32 %v115, %v120
    %v123 = vld [vmem:[#allocation2] sm:$0x1]
    %vm124 = vcmask 31744
    %v125 = vsel %vm124, %v122, 0.0
    %v126 = vrot.slane %v125, 4
    %v127 = vadd.f32 %v125, %v126
    %v128 = vrot.slane %v127, 2
    %v129 = vadd.f32 %v127, %v128
    %v130 = vrot.slane %v129, 1
    %v131 = vadd.f32 %v129, %v130
    %v132 = vadd.f32 %v123, %v131
    %vm133 = vcmask 24576
    %134 = vst.msk [vmem:[#allocation2] sm:$0x1] %vm133, %v132
    // Predicated region
    $region26: #{tpu_custom_call.1} parent=1 // pred_check
      _
    $region27: #{tpu_custom_call.1} parent=1 // pred_check_branch
      %136 = sbr.rel (0) target = $region29
    $region28: #{tpu_custom_call.1} parent=1 // pred_region
      %s138 = ssub.s32 16, 16
      %139 = vsyncadd [#allocation3], %s138
      %s141 = sshll.u32 [#allocation2], 4
      %s142 = int_to_ptr.vmem [resolvable:$true] %s141
      %144 = dma.vmem_to_hbm [thread:$0]  %s142, 16, %s5, [#allocation3]
    $region29: #{tpu_custom_call.1} parent=1 // pred_fallthru
      _
    // Predicated region
    $region30: #{tpu_custom_call.1} parent=1 // pred_check
      _
    $region31: #{tpu_custom_call.1} parent=1 // pred_check_branch
      %146 = sbr.rel (0) target = $region33
    $region32: #{tpu_custom_call.1} parent=1 // pred_region
      %147 = dma.done [#allocation3], 16
    $region33: #{tpu_custom_call.1} parent=1 // pred_fallthru
      _
    %148 = vsyncpa [#allocation3], 1

</llo_original>
